<compile_context>
chip_gen: v7x
topology: tpu7x:2x2x1
jax: 0.10.0
libtpu: 0.0.40
codegen_flags: <defaults>
</compile_context>

<pallas_src>
import jax
import jax.numpy as jnp
import numpy as np
from jax.experimental import pallas as pl
from jax.experimental.pallas import tpu as pltpu

# ------------------------- hyperparameters (module defaults, small) ----------
V = 10          # hp_vocab_size
E = 50          # hp_word_emb_size
C = 32          # hp_conv_size
K = 3           # hp_conv_width
DIL_DEPTH = 1   # hp_dilated_conv_depth
REPEAT = 1      # hp_repeat_cnn
OUT = C // 2    # hp_add_top_dense_layer=True -> output_vector_size
B, S = 2, 16    # batch, sequence length
BS = B * S
E_PAD = ((E + 7) // 8) * 8        # 56: pad emb channels to a sublane multiple

# ----------------- packed-parameter row offsets (all multiples of 8) ---------
W_IN_OFF = 0
W_IN_ROWS = K * E_PAD                      # 168
W_DIL_OFF = W_IN_OFF + W_IN_ROWS           # 168
W_DIL_ROWS = K * C                         # 96
W_OUT_OFF = W_DIL_OFF + W_DIL_ROWS         # 264
W_OUT_ROWS = K * C                         # 96
W_D_OFF = W_OUT_OFF + W_OUT_ROWS           # 360
W_D_ROWS = C                               # 32
B_IN_ROW = W_D_OFF + W_D_ROWS              # 392
B_DIL_ROW = B_IN_ROW + 1                   # 393
B_OUT_ROW = B_DIL_ROW + 1                  # 394
B_D_ROW = B_OUT_ROW + 1                    # 395
PACK_ROWS = ((B_D_ROW + 1 + 7) // 8) * 8   # 400


# ------------------------------ Pallas kernel --------------------------------
def conv_words_encoder_kernel(x_ref, mask_ref, w_ref, o_ref):
    # position of each row within its own sequence: (B*S, 1) int32
    pos = jax.lax.broadcasted_iota(jnp.int32, (BS, 1), 0) % S

    def conv_relu(h, w, b, dil):
        """Same-padding dilated conv (K=3) as ONE fused im2col matmul + ReLU."""
        # tap k=0 -> x[t - dil]  (roll down, zero first `dil` rows of each seq)
        left = jnp.where(pos >= dil, pltpu.roll(h, shift=dil, axis=0), 0.0)
        # tap k=2 -> x[t + dil]  (roll up, zero last `dil` rows of each seq)
        right = jnp.where(pos < S - dil, pltpu.roll(h, shift=BS - dil, axis=0), 0.0)
        xcat = jnp.concatenate([left, h, right], axis=-1)          # (BS, 3*Cin)
        y = jnp.dot(xcat, w, preferred_element_type=jnp.float32) + b
        return jnp.maximum(y, 0.0)

    x = x_ref[...]                                                 # (BS, E_PAD)

    w_in = w_ref[W_IN_OFF:W_IN_OFF + W_IN_ROWS, :]                 # (168, C)
    w_dil = w_ref[W_DIL_OFF:W_DIL_OFF + W_DIL_ROWS, :]             # (96, C)
    w_out = w_ref[W_OUT_OFF:W_OUT_OFF + W_OUT_ROWS, :]             # (96, C)
    w_d = w_ref[W_D_OFF:W_D_OFF + W_D_ROWS, :]                     # (C, C) (cols>=OUT zero)
    b_in = w_ref[B_IN_ROW:B_IN_ROW + 1, :]                         # (1, C)
    b_dil = w_ref[B_DIL_ROW:B_DIL_ROW + 1, :]
    b_out = w_ref[B_OUT_ROW:B_OUT_ROW + 1, :]
    b_d = w_ref[B_D_ROW:B_D_ROW + 1, :]

    h = conv_relu(x, w_in, b_in, 1)                                # _block_conv_in
    # TODO(synk): nn.Dropout is identity in eval mode; not applied here.
    for _ in range(REPEAT):
        for j in range(DIL_DEPTH):
            h = conv_relu(h, w_dil, b_dil, 2 ** (j + 1))           # dilated convs
        h = conv_relu(h, w_out, b_out, 1)                          # _block_conv_out

    h = h * mask_ref[...]                                          # zero padded positions
    # AdaptiveMaxPool1d(1): per-sequence max over the S rows of each batch elem.
    v = jnp.concatenate(
        [jnp.max(h[b * S:(b + 1) * S, :], axis=0, keepdims=True) for b in range(B)],
        axis=0)                                                    # (B, C)
    out = jnp.dot(v, w_d, preferred_element_type=jnp.float32) + b_d
    o_ref[...] = jnp.maximum(out, 0.0)                             # _semantic_layer + ReLU


@jax.jit
def conv_words_encoder(ids, emb_tbl_pad, w_pack):
    """ids: (B, S) int32.  Returns (B, C//2) float32."""
    x = emb_tbl_pad[ids].reshape(BS, E_PAD)                        # embedding gather (glue)
    mask = (ids != 0).astype(jnp.float32).reshape(BS, 1)
    out = pl.pallas_call(
        conv_words_encoder_kernel,
        out_shape=jax.ShapeDtypeStruct((B, C), jnp.float32),
    )(x, mask, w_pack)
    return out[:, :OUT]                                            # drop padded output lanes


# -------------------------- parameter fusion / packing -----------------------
def fuse_conv_weight(w_t, cin_pad):
    """Torch Conv1d weight (Cout, Cin, K) -> fused im2col weight (K*cin_pad, Cout)."""
    cout, cin, k = w_t.shape
    w = jnp.transpose(w_t, (2, 1, 0))                              # (K, Cin, Cout)
    w = jnp.pad(w, ((0, 0), (0, cin_pad - cin), (0, 0)))
    return w.reshape(k * cin_pad, cout)


def pack_params(w_in_t, b_in, w_dil_t, b_dil, w_out_t, b_out, w_d, b_d):
    parts = [
        fuse_conv_weight(w_in_t, E_PAD),                           # (168, C)
        fuse_conv_weight(w_dil_t, C),                              # (96, C)
        fuse_conv_weight(w_out_t, C),                              # (96, C)
        jnp.pad(w_d, ((0, 0), (0, C - OUT))),                      # (C, C)
        b_in.reshape(1, C),
        b_dil.reshape(1, C),
        b_out.reshape(1, C),
        jnp.pad(b_d, (0, C - OUT)).reshape(1, C),
        jnp.zeros((PACK_ROWS - (B_D_ROW + 1), C), jnp.float32),    # align to 8 rows
    ]
    return jnp.concatenate(parts, axis=0)                          # (400, C)


# ----------------------------- pure-JAX reference ----------------------------
def reference(ids, torch_params):
    emb_tbl, w_in_t, b_in, w_dil_t, b_dil, w_out_t, b_out, w_d, b_d = torch_params
    x = jnp.transpose(emb_tbl[ids], (0, 2, 1))                     # (B, E, S)  NCW

    def conv(x, w, b, dil):                                        # w: (Cout, Cin, K)
        pad = (w.shape[-1] // 2) * dil
        y = jax.lax.conv_general_dilated(
            x, w, window_strides=(1,), padding=[(pad, pad)], rhs_dilation=(dil,),
            dimension_numbers=("NCH", "OIH", "NCH"))
        return jax.nn.relu(y + b[None, :, None])

    x = conv(x, w_in_t, b_in, 1)
    for _ in range(REPEAT):
        for j in range(DIL_DEPTH):
            x = conv(x, w_dil_t, b_dil, 2 ** (j + 1))
        x = conv(x, w_out_t, b_out, 1)
    mask = (ids != 0).astype(jnp.float32)[:, None, :]              # (B, 1, S)
    x = x * mask
    v = jnp.max(x, axis=-1)                                        # (B, C)
    return jax.nn.relu(v @ w_d + b_d[None, :])


# ------------------------------------ main ------------------------------------
if __name__ == "__main__":
    key = jax.random.PRNGKey(0)
    ks = jax.random.split(key, 11)

    emb_tbl = jax.random.normal(ks[0], (V, E), jnp.float32)
    emb_tbl = emb_tbl.at[0].set(0.0)                               # padding_idx=0

    # PyTorch-layout weights: Conv1d (Cout, Cin, K); Linear stored as (in, out).
    w_in_t = jax.random.normal(ks[1], (C, E, K), jnp.float32) * 0.1
    b_in = jax.random.normal(ks[2], (C,), jnp.float32) * 0.1
    w_dil_t = jax.random.normal(ks[3], (C, C, K), jnp.float32) * 0.1
    b_dil = jax.random.normal(ks[4], (C,), jnp.float32) * 0.1
    w_out_t = jax.random.normal(ks[5], (C, C, K), jnp.float32) * 0.1
    b_out = jax.random.normal(ks[6], (C,), jnp.float32) * 0.1
    w_d = jax.random.normal(ks[7], (C, OUT), jnp.float32) * 0.1
    b_d = jax.random.normal(ks[8], (OUT,), jnp.float32) * 0.1

    ids = jax.random.randint(ks[9], (B, S), 0, V, dtype=jnp.int32)  # zeros = padding

    emb_tbl_pad = jnp.pad(emb_tbl, ((0, 0), (0, E_PAD - E)))        # (V, 56)
    w_pack = pack_params(w_in_t, b_in, w_dil_t, b_dil, w_out_t, b_out, w_d, b_d)
    torch_params = (emb_tbl, w_in_t, b_in, w_dil_t, b_dil, w_out_t, b_out, w_d, b_d)

    out = jax.block_until_ready(conv_words_encoder(ids, emb_tbl_pad, w_pack))
    ref = jax.block_until_ready(reference(ids, torch_params))

    assert out.shape == (B, OUT), out.shape
    np.testing.assert_allclose(np.asarray(out), np.asarray(ref), atol=1e-4, rtol=1e-4)
    print("KERNEL_OK")
</pallas_src>

<mosaic_0001>
module attributes {stable_mosaic.version = 11 : i64} {
  func.func @conv_words_encoder_kernel(%arg0: memref<32x56xf32, #tpu.memory_space<vmem>>, %arg1: memref<32x1xf32, #tpu.memory_space<vmem>>, %arg2: memref<400x32xf32, #tpu.memory_space<vmem>>, %arg3: memref<2x32xf32, #tpu.memory_space<vmem>>) attributes {dimension_semantics = [], scalar_prefetch = 0 : i64, scratch_operands = 0 : i64, tpu.core_type = #tpu.core_type<tc>} {
    %0 = tpu.iota {dimensions = array<i32: 0>} : vector<32x1xi32>
    %c16_i32 = arith.constant 16 : i32
    %c0_i32 = arith.constant 0 : i32
    %1 = arith.cmpi eq, %c16_i32, %c0_i32 : i32
    %c1_i32 = arith.constant 1 : i32
    %2 = arith.select %1, %c1_i32, %c16_i32 : i32
    %3 = vector.broadcast %2 : i32 to vector<32x1xi32>
    %4 = arith.remsi %0, %3 : vector<32x1xi32>
    %c0_i32_0 = arith.constant 0 : i32
    %5 = vector.broadcast %c0_i32_0 : i32 to vector<32x1xi32>
    %6 = arith.cmpi ne, %4, %5 : vector<32x1xi32>
    %c0_i32_1 = arith.constant 0 : i32
    %7 = vector.broadcast %c0_i32_1 : i32 to vector<32x1xi32>
    %8 = arith.cmpi slt, %4, %7 : vector<32x1xi32>
    %c0_i32_2 = arith.constant 0 : i32
    %9 = arith.cmpi slt, %2, %c0_i32_2 : i32
    %10 = vector.broadcast %9 : i1 to vector<32x1xi1>
    %11 = vector.broadcast %10 : vector<32x1xi1> to vector<32x1xi1>
    %12 = arith.xori %8, %11 : vector<32x1xi1>
    %13 = arith.andi %12, %6 : vector<32x1xi1>
    %14 = vector.broadcast %2 : i32 to vector<32x1xi32>
    %15 = arith.addi %4, %14 : vector<32x1xi32>
    %16 = arith.select %13, %15, %4 : vector<32x1xi1>, vector<32x1xi32>
    %c0 = arith.constant 0 : index
    %c0_3 = arith.constant 0 : index
    %17 = vector.load %arg0[%c0, %c0_3] : memref<32x56xf32, #tpu.memory_space<vmem>>, vector<32x56xf32>
    %c0_4 = arith.constant 0 : index
    %c0_5 = arith.constant 0 : index
    %18 = vector.load %arg2[%c0_4, %c0_5] : memref<400x32xf32, #tpu.memory_space<vmem>>, vector<168x32xf32>
    %c168 = arith.constant 168 : index
    %c0_6 = arith.constant 0 : index
    %19 = vector.load %arg2[%c168, %c0_6] : memref<400x32xf32, #tpu.memory_space<vmem>>, vector<96x32xf32>
    %c264 = arith.constant 264 : index
    %c0_7 = arith.constant 0 : index
    %20 = vector.load %arg2[%c264, %c0_7] : memref<400x32xf32, #tpu.memory_space<vmem>>, vector<96x32xf32>
    %c360 = arith.constant 360 : index
    %c0_8 = arith.constant 0 : index
    %21 = vector.load %arg2[%c360, %c0_8] : memref<400x32xf32, #tpu.memory_space<vmem>>, vector<32x32xf32>
    %c392 = arith.constant 392 : index
    %c0_9 = arith.constant 0 : index
    %22 = vector.load %arg2[%c392, %c0_9] : memref<400x32xf32, #tpu.memory_space<vmem>>, vector<1x32xf32>
    %c393 = arith.constant 393 : index
    %c0_10 = arith.constant 0 : index
    %23 = vector.load %arg2[%c393, %c0_10] : memref<400x32xf32, #tpu.memory_space<vmem>>, vector<1x32xf32>
    %c394 = arith.constant 394 : index
    %c0_11 = arith.constant 0 : index
    %24 = vector.load %arg2[%c394, %c0_11] : memref<400x32xf32, #tpu.memory_space<vmem>>, vector<1x32xf32>
    %c395 = arith.constant 395 : index
    %c0_12 = arith.constant 0 : index
    %25 = vector.load %arg2[%c395, %c0_12] : memref<400x32xf32, #tpu.memory_space<vmem>>, vector<1x32xf32>
    %c1_i32_13 = arith.constant 1 : i32
    %26 = vector.broadcast %c1_i32_13 : i32 to vector<32x1xi32>
    %27 = arith.cmpi sge, %16, %26 : vector<32x1xi32>
    %c1_i32_14 = arith.constant 1 : i32
    %28 = tpu.dynamic_rotate %17 by %c1_i32_14 dim 0 : vector<32x56xf32>, i32 -> vector<32x56xf32>
    %cst = arith.constant 0.000000e+00 : f32
    %29 = vector.shape_cast %27 : vector<32x1xi1> to vector<32x1xi1>
    %30 = vector.broadcast %29 : vector<32x1xi1> to vector<32x56xi1>
    %31 = vector.broadcast %cst : f32 to vector<32x56xf32>
    %32 = arith.select %30, %28, %31 : vector<32x56xi1>, vector<32x56xf32>
    %c15_i32 = arith.constant 15 : i32
    %33 = vector.broadcast %c15_i32 : i32 to vector<32x1xi32>
    %34 = arith.cmpi slt, %16, %33 : vector<32x1xi32>
    %c31_i32 = arith.constant 31 : i32
    %35 = tpu.dynamic_rotate %17 by %c31_i32 dim 0 : vector<32x56xf32>, i32 -> vector<32x56xf32>
    %cst_15 = arith.constant 0.000000e+00 : f32
    %36 = vector.shape_cast %34 : vector<32x1xi1> to vector<32x1xi1>
    %37 = vector.broadcast %36 : vector<32x1xi1> to vector<32x56xi1>
    %38 = vector.broadcast %cst_15 : f32 to vector<32x56xf32>
    %39 = arith.select %37, %35, %38 : vector<32x56xi1>, vector<32x56xf32>
    %40 = tpu.concatenate %32, %17, %39 in 1 : vector<32x56xf32>, vector<32x56xf32>, vector<32x56xf32> -> vector<32x168xf32>
    %cst_16 = arith.constant dense<0.000000e+00> : vector<32x32xf32>
    %41 = tpu.matmul %40, %18, %cst_16 {dimension_numbers = #tpu.dot_dimension_numbers<[1], [0], [0], [1], [0, 0, 1, 1], [], []>} : vector<32x168xf32>, vector<168x32xf32>, vector<32x32xf32> -> vector<32x32xf32>
    %42 = vector.broadcast %22 : vector<1x32xf32> to vector<32x32xf32>
    %43 = arith.addf %41, %42 : vector<32x32xf32>
    %cst_17 = arith.constant 0.000000e+00 : f32
    %44 = vector.broadcast %cst_17 : f32 to vector<32x32xf32>
    %45 = arith.maximumf %43, %44 : vector<32x32xf32>
    %c2_i32 = arith.constant 2 : i32
    %46 = vector.broadcast %c2_i32 : i32 to vector<32x1xi32>
    %47 = arith.cmpi sge, %16, %46 : vector<32x1xi32>
    %c2_i32_18 = arith.constant 2 : i32
    %48 = tpu.dynamic_rotate %45 by %c2_i32_18 dim 0 : vector<32x32xf32>, i32 -> vector<32x32xf32>
    %cst_19 = arith.constant 0.000000e+00 : f32
    %49 = vector.shape_cast %47 : vector<32x1xi1> to vector<32x1xi1>
    %50 = vector.broadcast %49 : vector<32x1xi1> to vector<32x32xi1>
    %51 = vector.broadcast %cst_19 : f32 to vector<32x32xf32>
    %52 = arith.select %50, %48, %51 : vector<32x32xi1>, vector<32x32xf32>
    %c14_i32 = arith.constant 14 : i32
    %53 = vector.broadcast %c14_i32 : i32 to vector<32x1xi32>
    %54 = arith.cmpi slt, %16, %53 : vector<32x1xi32>
    %c30_i32 = arith.constant 30 : i32
    %55 = tpu.dynamic_rotate %45 by %c30_i32 dim 0 : vector<32x32xf32>, i32 -> vector<32x32xf32>
    %cst_20 = arith.constant 0.000000e+00 : f32
    %56 = vector.shape_cast %54 : vector<32x1xi1> to vector<32x1xi1>
    %57 = vector.broadcast %56 : vector<32x1xi1> to vector<32x32xi1>
    %58 = vector.broadcast %cst_20 : f32 to vector<32x32xf32>
    %59 = arith.select %57, %55, %58 : vector<32x32xi1>, vector<32x32xf32>
    %60 = tpu.concatenate %52, %45, %59 in 1 : vector<32x32xf32>, vector<32x32xf32>, vector<32x32xf32> -> vector<32x96xf32>
    %cst_21 = arith.constant dense<0.000000e+00> : vector<32x32xf32>
    %61 = tpu.matmul %60, %19, %cst_21 {dimension_numbers = #tpu.dot_dimension_numbers<[1], [0], [0], [1], [0, 0, 1, 1], [], []>} : vector<32x96xf32>, vector<96x32xf32>, vector<32x32xf32> -> vector<32x32xf32>
    %62 = vector.broadcast %23 : vector<1x32xf32> to vector<32x32xf32>
    %63 = arith.addf %61, %62 : vector<32x32xf32>
    %cst_22 = arith.constant 0.000000e+00 : f32
    %64 = vector.broadcast %cst_22 : f32 to vector<32x32xf32>
    %65 = arith.maximumf %63, %64 : vector<32x32xf32>
    %c1_i32_23 = arith.constant 1 : i32
    %66 = vector.broadcast %c1_i32_23 : i32 to vector<32x1xi32>
    %67 = arith.cmpi sge, %16, %66 : vector<32x1xi32>
    %c1_i32_24 = arith.constant 1 : i32
    %68 = tpu.dynamic_rotate %65 by %c1_i32_24 dim 0 : vector<32x32xf32>, i32 -> vector<32x32xf32>
    %cst_25 = arith.constant 0.000000e+00 : f32
    %69 = vector.shape_cast %67 : vector<32x1xi1> to vector<32x1xi1>
    %70 = vector.broadcast %69 : vector<32x1xi1> to vector<32x32xi1>
    %71 = vector.broadcast %cst_25 : f32 to vector<32x32xf32>
    %72 = arith.select %70, %68, %71 : vector<32x32xi1>, vector<32x32xf32>
    %c15_i32_26 = arith.constant 15 : i32
    %73 = vector.broadcast %c15_i32_26 : i32 to vector<32x1xi32>
    %74 = arith.cmpi slt, %16, %73 : vector<32x1xi32>
    %c31_i32_27 = arith.constant 31 : i32
    %75 = tpu.dynamic_rotate %65 by %c31_i32_27 dim 0 : vector<32x32xf32>, i32 -> vector<32x32xf32>
    %cst_28 = arith.constant 0.000000e+00 : f32
    %76 = vector.shape_cast %74 : vector<32x1xi1> to vector<32x1xi1>
    %77 = vector.broadcast %76 : vector<32x1xi1> to vector<32x32xi1>
    %78 = vector.broadcast %cst_28 : f32 to vector<32x32xf32>
    %79 = arith.select %77, %75, %78 : vector<32x32xi1>, vector<32x32xf32>
    %80 = tpu.concatenate %72, %65, %79 in 1 : vector<32x32xf32>, vector<32x32xf32>, vector<32x32xf32> -> vector<32x96xf32>
    %cst_29 = arith.constant dense<0.000000e+00> : vector<32x32xf32>
    %81 = tpu.matmul %80, %20, %cst_29 {dimension_numbers = #tpu.dot_dimension_numbers<[1], [0], [0], [1], [0, 0, 1, 1], [], []>} : vector<32x96xf32>, vector<96x32xf32>, vector<32x32xf32> -> vector<32x32xf32>
    %82 = vector.broadcast %24 : vector<1x32xf32> to vector<32x32xf32>
    %83 = arith.addf %81, %82 : vector<32x32xf32>
    %cst_30 = arith.constant 0.000000e+00 : f32
    %84 = vector.broadcast %cst_30 : f32 to vector<32x32xf32>
    %85 = arith.maximumf %83, %84 : vector<32x32xf32>
    %c0_31 = arith.constant 0 : index
    %c0_32 = arith.constant 0 : index
    %86 = vector.load %arg1[%c0_31, %c0_32] : memref<32x1xf32, #tpu.memory_space<vmem>>, vector<32x1xf32>
    %87 = vector.broadcast %86 : vector<32x1xf32> to vector<32x32xf32>
    %88 = arith.mulf %85, %87 : vector<32x32xf32>
    %89 = vector.extract_strided_slice %88 {offsets = [0, 0], sizes = [16, 32], strides = [1, 1]} : vector<32x32xf32> to vector<16x32xf32>
    %cst_33 = arith.constant dense<0xFF800000> : vector<32xf32>
    %90 = vector.multi_reduction <maximumf>, %89, %cst_33 [0] : vector<16x32xf32> to vector<32xf32>
    %91 = vector.shape_cast %90 : vector<32xf32> to vector<1x32xf32>
    %92 = vector.extract_strided_slice %88 {offsets = [16, 0], sizes = [16, 32], strides = [1, 1]} : vector<32x32xf32> to vector<16x32xf32>
    %cst_34 = arith.constant dense<0xFF800000> : vector<32xf32>
    %93 = vector.multi_reduction <maximumf>, %92, %cst_34 [0] : vector<16x32xf32> to vector<32xf32>
    %94 = vector.shape_cast %93 : vector<32xf32> to vector<1x32xf32>
    %95 = tpu.concatenate %91, %94 in 0 : vector<1x32xf32>, vector<1x32xf32> -> vector<2x32xf32>
    %cst_35 = arith.constant dense<0.000000e+00> : vector<2x32xf32>
    %96 = tpu.matmul %95, %21, %cst_35 {dimension_numbers = #tpu.dot_dimension_numbers<[1], [0], [0], [1], [0, 0, 1, 1], [], []>} : vector<2x32xf32>, vector<32x32xf32>, vector<2x32xf32> -> vector<2x32xf32>
    %97 = vector.broadcast %25 : vector<1x32xf32> to vector<2x32xf32>
    %98 = arith.addf %96, %97 : vector<2x32xf32>
    %cst_36 = arith.constant 0.000000e+00 : f32
    %99 = vector.broadcast %cst_36 : f32 to vector<2x32xf32>
    %100 = arith.maximumf %98, %99 : vector<2x32xf32>
    %c0_37 = arith.constant 0 : index
    %c0_38 = arith.constant 0 : index
    %101 = vector.load %arg3[%c0_37, %c0_38] : memref<2x32xf32, #tpu.memory_space<vmem>>, vector<2x32xf32>
    tpu.vector_store %arg3[%c0_37, %c0_38], %100 {strides = array<i32>} : memref<2x32xf32, #tpu.memory_space<vmem>>, vector<2x32xf32>,
    return
  }
}

</mosaic_0001>

<llo_original>
// kernel: conv_words_encoder.1
$region0: #{conv_words_encoder.1}
  #allocation0 [shape = 'u32[]', space=smem, size = 0x4, offset = 0x4, fixed_abs, tag = 'smem constant byte address 0x4 - core index']
  #allocation1 [shape = 'u32[144,128]{1,0:T(1,128)}', space=vmem, size = 0x12000, scoped, tag = 'internal scratch']
  %s0 = inlined_call_operand.vmem [shape: f32[32,56], index: 0, kind: input, shape index: {}]
  %s1 = inlined_call_operand.vmem [shape: f32[32,1], index: 1, kind: input, shape index: {}]
  %s2 = inlined_call_operand.vmem [shape: f32[400,32], index: 2, kind: input, shape index: {}]
  %s3 = inlined_call_operand.hbm [shape: f32[2,32], index: 3, kind: output, shape index: {}]
  %s4 = sld [smem:[#allocation0]]
  $region22: #{conv_words_encoder.1} parent=0
    _
  %s6 = ssub.s32 1, %s4
  %s7 = scalar_select 0, %s6, %s4
  $region1: #{conv_words_encoder.1} parent=0
    #allocation2 [shape = 'u8[1024]{0}', space=vmem, size = 0x400, scoped, tag = 'output window, operand 0, single buffered']
    #allocation3 [shape = 's32[1]{0}', space=sflag, size = 0x4, scoped, tag = 'scoped memory for conv_words_encoder.1']
    %8 = vsyncpa [#allocation3], 0
    // Predicated region
    $region2: #{conv_words_encoder.1} parent=1 // pred_check
      _
    $region3: #{conv_words_encoder.1} parent=1 // pred_check_branch
      %10 = sbr.rel (0) target = $region5
    $region4: #{conv_words_encoder.1} parent=1 // pred_region
      _
    $region5: #{conv_words_encoder.1} parent=1 // pred_fallthru
      _
    // Predicated region
    $region6: #{conv_words_encoder.1} parent=1 // pred_check
      _
    $region7: #{conv_words_encoder.1} parent=1 // pred_check_branch
      %12 = sbr.rel (0) target = $region9
    $region8: #{conv_words_encoder.1} parent=1 // pred_region
      _
    $region9: #{conv_words_encoder.1} parent=1 // pred_fallthru
      _
    // Predicated region
    $region10: #{conv_words_encoder.1} parent=1 // pred_check
      _
    $region11: #{conv_words_encoder.1} parent=1 // pred_check_branch
      %14 = sbr.rel (0) target = $region13
    $region12: #{conv_words_encoder.1} parent=1 // pred_region
      _
    $region13: #{conv_words_encoder.1} parent=1 // pred_fallthru
      _
    %v15 = vlaneseq
    %v16 = vshrl.u32 %v15, 7
    %v17 = vadd.s32 %v16, 8
    %v18 = vadd.s32 %v16, 16
    %v19 = vadd.s32 %v16, 24
    %vm20 = vcmp.lt.s32.totalorder %v16, 0
    %v21 = vsub.s32 0, %v16
    %v22 = vsel %vm20, %v21, %v16
    %v23 = vshrl.u32 %v22, 4
    %v24 = vand.u32 %v22, 15
    %v25 = vsub.s32 0, %v24
    %v26 = vsel %vm20, %v25, %v24
    %vm27 = vcmp.lt.s32.totalorder %v17, 0
    %v28 = vsub.s32 0, %v17
    %v29 = vsel %vm27, %v28, %v17
    %v30 = vshrl.u32 %v29, 4
    %v31 = vand.u32 %v29, 15
    %v32 = vsub.s32 0, %v31
    %v33 = vsel %vm27, %v32, %v31
    %vm34 = vcmp.lt.s32.totalorder %v18, 0
    %v35 = vsub.s32 0, %v18
    %v36 = vsel %vm34, %v35, %v18
    %v37 = vshrl.u32 %v36, 4
    %v38 = vand.u32 %v36, 15
    %v39 = vsub.s32 0, %v38
    %v40 = vsel %vm34, %v39, %v38
    %vm41 = vcmp.lt.s32.totalorder %v19, 0
    %v42 = vsub.s32 0, %v19
    %v43 = vsel %vm41, %v42, %v19
    %v44 = vshrl.u32 %v43, 4
    %v45 = vand.u32 %v43, 15
    %v46 = vsub.s32 0, %v45
    %v47 = vsel %vm41, %v46, %v45
    %vm48 = vcmp.ne.s32.totalorder %v26, 0
    %vm49 = vcmp.ne.s32.totalorder %v33, 0
    %vm50 = vcmp.ne.s32.totalorder %v40, 0
    %vm51 = vcmp.ne.s32.totalorder %v47, 0
    %vm52 = vcmp.lt.s32.totalorder %v26, 0
    %vm53 = vcmp.lt.s32.totalorder %v33, 0
    %vm54 = vcmp.lt.s32.totalorder %v40, 0
    %vm55 = vcmp.lt.s32.totalorder %v47, 0
    %vm56 = vmand %vm52, %vm48
    %vm57 = vmand %vm53, %vm49
    %vm58 = vmand %vm54, %vm50
    %vm59 = vmand %vm55, %vm51
    %v60 = vadd.s32 %v26, 16
    %v61 = vadd.s32 %v33, 16
    %v62 = vadd.s32 %v40, 16
    %v63 = vadd.s32 %v47, 16
    %v64 = vsel %vm56, %v60, %v26
    %v65 = vsel %vm57, %v61, %v33
    %v66 = vsel %vm58, %v62, %v40
    %v67 = vsel %vm59, %v63, %v47
    %v68 = vld [vmem:[%s0] sm:$0xff]
    %v69 = vld [vmem:[%s0 + $0x8] sm:$0xff]
    %v70 = vld [vmem:[%s0 + $0x10] sm:$0xff]
    %v71 = vld [vmem:[%s0 + $0x18] sm:$0xff]
    %v72 = vld [vmem:[%s2] sm:$0xff]
    %v73 = vld [vmem:[%s2 + $0x8] sm:$0xff]
    %v74 = vld [vmem:[%s2 + $0x10] sm:$0xff]
    %v75 = vld [vmem:[%s2 + $0x18] sm:$0xff]
    %v76 = vld [vmem:[%s2 + $0x20] sm:$0xff]
    %v77 = vld [vmem:[%s2 + $0x28] sm:$0xff]
    %v78 = vld [vmem:[%s2 + $0x30] sm:$0xff]
    %v79 = vld [vmem:[%s2 + $0x38] sm:$0xff]
    %v80 = vld [vmem:[%s2 + $0x40] sm:$0xff]
    %v81 = vld [vmem:[%s2 + $0x48] sm:$0xff]
    %v82 = vld [vmem:[%s2 + $0x50] sm:$0xff]
    %v83 = vld [vmem:[%s2 + $0x58] sm:$0xff]
    %v84 = vld [vmem:[%s2 + $0x60] sm:$0xff]
    %v85 = vld [vmem:[%s2 + $0x68] sm:$0xff]
    %v86 = vld [vmem:[%s2 + $0x70] sm:$0xff]
    %v87 = vld [vmem:[%s2 + $0x78] sm:$0xff]
    %v88 = vld [vmem:[%s2 + $0x80] sm:$0xff]
    %v89 = vld [vmem:[%s2 + $0x88] sm:$0xff]
    %v90 = vld [vmem:[%s2 + $0x90] sm:$0xff]
    %v91 = vld [vmem:[%s2 + $0x98] sm:$0xff]
    %v92 = vld [vmem:[%s2 + $0xa0] sm:$0xff]
    %v93 = vld [vmem:[%s2 + $0xa8] sm:$0xff]
    %v94 = vld [vmem:[%s2 + $0xb0] sm:$0xff]
    %v95 = vld [vmem:[%s2 + $0xb8] sm:$0xff]
    %v96 = vld [vmem:[%s2 + $0xc0] sm:$0xff]
    %v97 = vld [vmem:[%s2 + $0xc8] sm:$0xff]
    %v98 = vld [vmem:[%s2 + $0xd0] sm:$0xff]
    %v99 = vld [vmem:[%s2 + $0xd8] sm:$0xff]
    %v100 = vld [vmem:[%s2 + $0xe0] sm:$0xff]
    %v101 = vld [vmem:[%s2 + $0xe8] sm:$0xff]
    %v102 = vld [vmem:[%s2 + $0xf0] sm:$0xff]
    %v103 = vld [vmem:[%s2 + $0xf8] sm:$0xff]
    %v104 = vld [vmem:[%s2 + $0x100] sm:$0xff]
    %v105 = vld [vmem:[%s2 + $0x108] sm:$0xff]
    %v106 = vld [vmem:[%s2 + $0x110] sm:$0xff]
    %v107 = vld [vmem:[%s2 + $0x118] sm:$0xff]
    %v108 = vld [vmem:[%s2 + $0x120] sm:$0xff]
    %v109 = vld [vmem:[%s2 + $0x128] sm:$0xff]
    %v110 = vld [vmem:[%s2 + $0x130] sm:$0xff]
    %v111 = vld [vmem:[%s2 + $0x138] sm:$0xff]
    %v112 = vld [vmem:[%s2 + $0x140] sm:$0xff]
    %v113 = vld [vmem:[%s2 + $0x148] sm:$0xff]
    %v114 = vld [vmem:[%s2 + $0x150] sm:$0xff]
    %v115 = vld [vmem:[%s2 + $0x158] sm:$0xff]
    %v116 = vld [vmem:[%s2 + $0x160] sm:$0xff]
    %v117 = vld [vmem:[%s2 + $0x168] sm:$0xff]
    %v118 = vld [vmem:[%s2 + $0x170] sm:$0xff]
    %v119 = vld [vmem:[%s2 + $0x178] sm:$0xff]
    %v120 = vld [vmem:[%s2 + $0x180] sm:$0xff]
    %v121 = vld [vmem:[%s2 + $0x188] sm:$0x1]
    %v122 = vld [vmem:[%s2 + $0x189] sm:$0x1]
    %v123 = vld [vmem:[%s2 + $0x18a] sm:$0x1]
    %v124 = vld [vmem:[%s2 + $0x18b] sm:$0x1]
    %vm125 = vcmp.ge.s32.totalorder %v64, 1
    %vm126 = vcmp.ge.s32.totalorder %v65, 1
    %vm127 = vcmp.ge.s32.totalorder %v66, 1
    %vm128 = vcmp.ge.s32.totalorder %v67, 1
    %v129 = vrot.slane %v68, 7
    %v130 = vrot.slane %v69, 7
    %v131 = vrot.slane %v70, 7
    %v132 = vrot.slane %v71, 7
    %vm133 = vcmp.lt.s32.totalorder %v16, 1
    %v134 = vsel %vm133, %v131, %v132
    %v135 = vsel %vm133, %v130, %v131
    %v136 = vsel %vm133, %v129, %v130
    %v137 = vsel %vm133, %v132, %v129
    %v138 = vsel %vm125, 1, 0
    %v139 = vsel %vm126, 1, 0
    %v140 = vsel %vm127, 1, 0
    %v141 = vsel %vm128, 1, 0
    %vm142 = vcmp.eq.s32.totalorder %v138, 1
    %vm143 = vcmp.eq.s32.totalorder %v139, 1
    %vm144 = vcmp.eq.s32.totalorder %v140, 1
    %vm145 = vcmp.eq.s32.totalorder %v141, 1
    %v146 = vsel %vm142, %v137, 0.0
    %v147 = vsel %vm143, %v136, 0.0
    %v148 = vsel %vm144, %v135, 0.0
    %v149 = vsel %vm145, %v134, 0.0
    %vm150 = vcmp.lt.s32.totalorder %v64, 15
    %vm151 = vcmp.lt.s32.totalorder %v65, 15
    %vm152 = vcmp.lt.s32.totalorder %v66, 15
    %vm153 = vcmp.lt.s32.totalorder %v67, 15
    %v154 = vrot.slane %v68, 1
    %v155 = vrot.slane %v69, 1
    %v156 = vrot.slane %v70, 1
    %v157 = vrot.slane %v71, 1
    %vm158 = vcmp.lt.s32.totalorder %v16, 7
    %v159 = vsel %vm158, %v156, %v157
    %v160 = vsel %vm158, %v155, %v156
    %v161 = vsel %vm158, %v154, %v155
    %v162 = vsel %vm158, %v157, %v154
    %v163 = vsel %vm150, 1, 0
    %v164 = vsel %vm151, 1, 0
    %v165 = vsel %vm152, 1, 0
    %v166 = vsel %vm153, 1, 0
    %vm167 = vcmp.eq.s32.totalorder %v163, 1
    %vm168 = vcmp.eq.s32.totalorder %v164, 1
    %vm169 = vcmp.eq.s32.totalorder %v165, 1
    %vm170 = vcmp.eq.s32.totalorder %v166, 1
    %v171 = vsel %vm167, %v161, 0.0
    %v172 = vsel %vm168, %v160, 0.0
    %v173 = vsel %vm169, %v159, 0.0
    %v174 = vsel %vm170, %v162, 0.0
    %179 = vrot.lane.b32.xlu0 %v68, 56
    %v180 = vpop.permute.xlu0 %179
    %181 = vrot.lane.b32.xlu0 %v69, 56
    %v182 = vpop.permute.xlu0 %181
    %183 = vrot.lane.b32.xlu0 %v70, 56
    %v184 = vpop.permute.xlu0 %183
    %185 = vrot.lane.b32.xlu0 %v71, 56
    %v186 = vpop.permute.xlu0 %185
    %195 = vrot.lane.b32.xlu0 %v171, 112
    %v196 = vpop.permute.xlu0 %195
    %197 = vrot.lane.b32.xlu0 %v172, 112
    %v198 = vpop.permute.xlu0 %197
    %199 = vrot.lane.b32.xlu0 %v173, 112
    %v200 = vpop.permute.xlu0 %199
    %201 = vrot.lane.b32.xlu0 %v174, 112
    %v202 = vpop.permute.xlu0 %201
    %vm207 = vcmask 457728
    %v208 = vsel %vm207, %v146, %v180
    %v209 = vsel %vm207, %v147, %v182
    %v210 = vsel %vm207, %v148, %v184
    %v211 = vsel %vm207, %v149, %v186
    %vm212 = vcmask 916480
    %v213 = vsel %vm212, %v208, %v196
    %v214 = vsel %vm212, %v209, %v198
    %v215 = vsel %vm212, %v210, %v200
    %v216 = vsel %vm212, %v211, %v202
    %v217 = vlaneseq
    %v218 = vshrl.u32 %v217, 7
    %v219 = vsub.s32 0, %v218
    %v220 = vrot.slane %v121, %v219
    %vm221 = vcmask 326656
    %v222 = vsel %vm221, %v196, 0
    %v224 = vsel %vm221, %v198, 0
    %v226 = vsel %vm221, %v200, 0
    %v228 = vsel %vm221, %v202, 0
    %230 = vmatprep.subr.mxu0 0.0
    %231 = vmatpush1.msra.mxu0 %v72
    %232 = vmatprep.subr.mxu0 0.0
    %233 = vmatpush1.msra.mxu0 %v73
    %234 = vmatprep.subr.mxu0 0.0
    %235 = vmatpush1.msra.mxu0 %v74
    %236 = vmatprep.subr.mxu0 0.0
    %237 = vmatpush1.msra.mxu0 %v75
    %238 = vmatprep.subr.mxu0 0.0
    %239 = vmatpush1.msra.mxu0 %v76
    %240 = vmatprep.subr.mxu0 0.0
    %241 = vmatpush1.msra.mxu0 %v77
    %242 = vmatprep.subr.mxu0 0.0
    %243 = vmatpush1.msra.mxu0 %v78
    %244 = vmatprep.subr.mxu0 0.0
    %245 = vmatpush1.msra.mxu0 %v79
    %246 = vmatprep.subr.mxu0 0.0
    %247 = vmatpush1.msra.mxu0 %v80
    %248 = vmatprep.subr.mxu0 0.0
    %249 = vmatpush1.msra.mxu0 %v81
    %250 = vmatprep.subr.mxu0 0.0
    %251 = vmatpush1.msra.mxu0 %v82
    %252 = vmatprep.subr.mxu0 0.0
    %253 = vmatpush1.msra.mxu0 %v83
    %254 = vmatprep.subr.mxu0 0.0
    %255 = vmatpush1.msra.mxu0 %v84
    %256 = vmatprep.subr.mxu0 0.0
    %257 = vmatpush1.msra.mxu0 %v85
    %258 = vmatprep.subr.mxu0 0.0
    %259 = vmatpush1.msra.mxu0 %v86
    %260 = vmatprep.subr.mxu0 0.0
    %261 = vmatpush1.msra.mxu0 %v87
    %262 = vmatprep.subr.mxu0 0.0
    %263 = vmatpush1.msra.mxu0 %v88
    %264 = vmatprep.subr.mxu0 0.0
    %265 = vmatpush1.msra.mxu0 %v89
    %266 = vmatprep.subr.mxu0 0.0
    %267 = vmatpush1.msra.mxu0 %v90
    %268 = vmatprep.subr.mxu0 0.0
    %269 = vmatpush1.msra.mxu0 %v91
    %270 = vmatprep.subr.mxu0 0.0
    %271 = vmatpush1.msra.mxu0 %v92
    %272 = vmatprep.subr.mxu0 0.0
    %273 = vmatpush1.msra.mxu0 0.0
    %274 = vmatprep.subr.mxu0 0.0
    %275 = vmatpush1.msra.mxu0 0.0
    %276 = vmatprep.subr.mxu0 0.0
    %277 = vmatpush1.msra.mxu0 0.0
    %278 = vmatprep.subr.mxu0 0.0
    %279 = vmatpush1.msra.mxu0 0.0
    %280 = vmatprep.subr.mxu0 0.0
    %281 = vmatpush1.msra.mxu0 0.0
    %282 = vmatprep.subr.mxu0 0.0
    %283 = vmatpush1.msra.mxu0 0.0
    %284 = vmatprep.subr.mxu0 0.0
    %285 = vmatpush1.msra.mxu0 0.0
    %286 = vmatprep.subr.mxu0 0.0
    %287 = vmatpush1.msra.mxu0 0.0
    %288 = vmatprep.subr.mxu0 0.0
    %289 = vmatpush1.msra.mxu0 0.0
    %290 = vmatprep.subr.mxu0 0.0
    %291 = vmatpush1.msra.mxu0 0.0
    %292 = vmatprep.subr.mxu0 0.0
    %293 = vmatpush1.msra.mxu0 0.0
    %294 = vmatprep.mubr.f32.mxu0 %v222
    %295 = vmatmul.mubr.f32.gmra.mrb[0].mxu0 %v213
    %v296 = vpop.f32.mrb[0].mxu0
    %v297 = vadd.f32 %v220, %v296
    %v298 = vpop.f32.mrb[0].mxu0
    %299 = vmatprep.mubr.f32.mxu0 %v224
    %300 = vmatmul.mubr.f32.gmra.mrb[0].mxu0 %v214
    %v301 = vpop.f32.mrb[0].mxu0
    %v302 = vadd.f32 %v220, %v301
    %v303 = vpop.f32.mrb[0].mxu0
    %304 = vmatprep.mubr.f32.mxu0 %v226
    %305 = vmatmul.mubr.f32.gmra.mrb[0].mxu0 %v215
    %v306 = vpop.f32.mrb[0].mxu0
    %v307 = vadd.f32 %v220, %v306
    %v308 = vpop.f32.mrb[0].mxu0
    %309 = vmatprep.mubr.f32.mxu0 %v228
    %310 = vmatmul.mubr.f32.gmra.mrb[0].mxu0 %v216
    %v311 = vpop.f32.mrb[0].mxu0
    %v312 = vadd.f32 %v220, %v311
    %v313 = vpop.f32.mrb[0].mxu0
    %314 = vdwg.mxu0
    %v315 = vmax.f32 %v297, 0.0
    %v316 = vmax.f32 %v302, 0.0
    %v317 = vmax.f32 %v307, 0.0
    %v318 = vmax.f32 %v312, 0.0
    %vm319 = vcmp.ge.s32.totalorder %v64, 2
    %vm320 = vcmp.ge.s32.totalorder %v65, 2
    %vm321 = vcmp.ge.s32.totalorder %v66, 2
    %vm322 = vcmp.ge.s32.totalorder %v67, 2
    %v323 = vrot.slane %v315, 6
    %v324 = vrot.slane %v316, 6
    %v325 = vrot.slane %v317, 6
    %v326 = vrot.slane %v318, 6
    %vm327 = vcmp.lt.s32.totalorder %v16, 2
    %v328 = vsel %vm327, %v325, %v326
    %v329 = vsel %vm327, %v324, %v325
    %v330 = vsel %vm327, %v323, %v324
    %v331 = vsel %vm327, %v326, %v323
    %v332 = vsel %vm319, 1, 0
    %v333 = vsel %vm320, 1, 0
    %v334 = vsel %vm321, 1, 0
    %v335 = vsel %vm322, 1, 0
    %vm336 = vcmp.eq.s32.totalorder %v332, 1
    %vm337 = vcmp.eq.s32.totalorder %v333, 1
    %vm338 = vcmp.eq.s32.totalorder %v334, 1
    %vm339 = vcmp.eq.s32.totalorder %v335, 1
    %v340 = vsel %vm336, %v331, 0.0
    %v341 = vsel %vm337, %v330, 0.0
    %v342 = vsel %vm338, %v329, 0.0
    %v343 = vsel %vm339, %v328, 0.0
    %vm344 = vcmp.lt.s32.totalorder %v64, 14
    %vm345 = vcmp.lt.s32.totalorder %v65, 14
    %vm346 = vcmp.lt.s32.totalorder %v66, 14
    %vm347 = vcmp.lt.s32.totalorder %v67, 14
    %v348 = vrot.slane %v315, 2
    %v349 = vrot.slane %v316, 2
    %v350 = vrot.slane %v317, 2
    %v351 = vrot.slane %v318, 2
    %vm352 = vcmp.lt.s32.totalorder %v16, 6
    %v353 = vsel %vm352, %v350, %v351
    %v354 = vsel %vm352, %v349, %v350
    %v355 = vsel %vm352, %v348, %v349
    %v356 = vsel %vm352, %v351, %v348
    %v357 = vsel %vm344, 1, 0
    %v358 = vsel %vm345, 1, 0
    %v359 = vsel %vm346, 1, 0
    %v360 = vsel %vm347, 1, 0
    %vm361 = vcmp.eq.s32.totalorder %v357, 1
    %vm362 = vcmp.eq.s32.totalorder %v358, 1
    %vm363 = vcmp.eq.s32.totalorder %v359, 1
    %vm364 = vcmp.eq.s32.totalorder %v360, 1
    %v365 = vsel %vm361, %v355, 0.0
    %v366 = vsel %vm362, %v354, 0.0
    %v367 = vsel %vm363, %v353, 0.0
    %v368 = vsel %vm364, %v356, 0.0
    %373 = vrot.lane.b32.xlu0 %v315, 32
    %v374 = vpop.permute.xlu0 %373
    %375 = vrot.lane.b32.xlu0 %v316, 32
    %v376 = vpop.permute.xlu0 %375
    %377 = vrot.lane.b32.xlu0 %v317, 32
    %v378 = vpop.permute.xlu0 %377
    %379 = vrot.lane.b32.xlu0 %v318, 32
    %v380 = vpop.permute.xlu0 %379
    %389 = vrot.lane.b32.xlu0 %v365, 64
    %v390 = vpop.permute.xlu0 %389
    %391 = vrot.lane.b32.xlu0 %v366, 64
    %v392 = vpop.permute.xlu0 %391
    %393 = vrot.lane.b32.xlu0 %v367, 64
    %v394 = vpop.permute.xlu0 %393
    %395 = vrot.lane.b32.xlu0 %v368, 64
    %v396 = vpop.permute.xlu0 %395
    %vm401 = vcmask 261120
    %v402 = vsel %vm401, %v340, %v374
    %v403 = vsel %vm401, %v341, %v376
    %v404 = vsel %vm401, %v342, %v378
    %v405 = vsel %vm401, %v343, %v380
    %vm406 = vcmask 523264
    %v407 = vsel %vm406, %v402, %v390
    %v408 = vsel %vm406, %v403, %v392
    %v409 = vsel %vm406, %v404, %v394
    %v410 = vsel %vm406, %v405, %v396
    %v411 = vlaneseq
    %v412 = vshrl.u32 %v411, 7
    %v413 = vsub.s32 0, %v412
    %v414 = vrot.slane %v122, %v413
    %vm415 = vcmask 785408
    %v417 = vsel %vm415, %v407, 0
    %v420 = vsel %vm415, %v408, 0
    %v423 = vsel %vm415, %v409, 0
    %v426 = vsel %vm415, %v410, 0
    %428 = vmatprep.subr.mxu0 0.0
    %429 = vmatpush1.msra.mxu0 %v93
    %430 = vmatprep.subr.mxu0 0.0
    %431 = vmatpush1.msra.mxu0 %v94
    %432 = vmatprep.subr.mxu0 0.0
    %433 = vmatpush1.msra.mxu0 %v95
    %434 = vmatprep.subr.mxu0 0.0
    %435 = vmatpush1.msra.mxu0 %v96
    %436 = vmatprep.subr.mxu0 0.0
    %437 = vmatpush1.msra.mxu0 %v97
    %438 = vmatprep.subr.mxu0 0.0
    %439 = vmatpush1.msra.mxu0 %v98
    %440 = vmatprep.subr.mxu0 0.0
    %441 = vmatpush1.msra.mxu0 %v99
    %442 = vmatprep.subr.mxu0 0.0
    %443 = vmatpush1.msra.mxu0 %v100
    %444 = vmatprep.subr.mxu0 0.0
    %445 = vmatpush1.msra.mxu0 %v101
    %446 = vmatprep.subr.mxu0 0.0
    %447 = vmatpush1.msra.mxu0 %v102
    %448 = vmatprep.subr.mxu0 0.0
    %449 = vmatpush1.msra.mxu0 %v103
    %450 = vmatprep.subr.mxu0 0.0
    %451 = vmatpush1.msra.mxu0 %v104
    %452 = vmatprep.subr.mxu0 0.0
    %453 = vmatpush1.msra.mxu0 0.0
    %454 = vmatprep.subr.mxu0 0.0
    %455 = vmatpush1.msra.mxu0 0.0
    %456 = vmatprep.subr.mxu0 0.0
    %457 = vmatpush1.msra.mxu0 0.0
    %458 = vmatprep.subr.mxu0 0.0
    %459 = vmatpush1.msra.mxu0 0.0
    %460 = vmatprep.subr.mxu0 0.0
    %461 = vmatpush1.msra.mxu0 0.0
    %462 = vmatprep.subr.mxu0 0.0
    %463 = vmatpush1.msra.mxu0 0.0
    %464 = vmatprep.subr.mxu0 0.0
    %465 = vmatpush1.msra.mxu0 0.0
    %466 = vmatprep.subr.mxu0 0.0
    %467 = vmatpush1.msra.mxu0 0.0
    %468 = vmatprep.subr.mxu0 0.0
    %469 = vmatpush1.msra.mxu0 0.0
    %470 = vmatprep.subr.mxu0 0.0
    %471 = vmatpush1.msra.mxu0 0.0
    %472 = vmatprep.subr.mxu0 0.0
    %473 = vmatpush1.msra.mxu0 0.0
    %474 = vmatprep.subr.mxu0 0.0
    %475 = vmatpush1.msra.mxu0 0.0
    %476 = vmatprep.subr.mxu0 0.0
    %477 = vmatpush1.msra.mxu0 0.0
    %478 = vmatprep.subr.mxu0 0.0
    %479 = vmatpush1.msra.mxu0 0.0
    %480 = vmatprep.subr.mxu0 0.0
    %481 = vmatpush1.msra.mxu0 0.0
    %482 = vmatprep.subr.mxu0 0.0
    %483 = vmatpush1.msra.mxu0 0.0
    %484 = vmatprep.subr.mxu0 0.0
    %485 = vmatpush1.msra.mxu0 0.0
    %486 = vmatprep.subr.mxu0 0.0
    %487 = vmatpush1.msra.mxu0 0.0
    %488 = vmatprep.subr.mxu0 0.0
    %489 = vmatpush1.msra.mxu0 0.0
    %490 = vmatprep.subr.mxu0 0.0
    %491 = vmatpush1.msra.mxu0 0.0
    %492 = vmatprep.mubr.f32.mxu0 0.0
    %493 = vmatmul.mubr.f32.gmra.mrb[0].mxu0 %v417
    %v494 = vpop.f32.mrb[0].mxu0
    %v495 = vadd.f32 %v414, %v494
    %v496 = vpop.f32.mrb[0].mxu0
    %497 = vmatprep.mubr.f32.mxu0 0.0
    %498 = vmatmul.mubr.f32.gmra.mrb[0].mxu0 %v420
    %v499 = vpop.f32.mrb[0].mxu0
    %v500 = vadd.f32 %v414, %v499
    %v501 = vpop.f32.mrb[0].mxu0
    %502 = vmatprep.mubr.f32.mxu0 0.0
    %503 = vmatmul.mubr.f32.gmra.mrb[0].mxu0 %v423
    %v504 = vpop.f32.mrb[0].mxu0
    %v505 = vadd.f32 %v414, %v504
    %v506 = vpop.f32.mrb[0].mxu0
    %507 = vmatprep.mubr.f32.mxu0 0.0
    %508 = vmatmul.mubr.f32.gmra.mrb[0].mxu0 %v426
    %v509 = vpop.f32.mrb[0].mxu0
    %v510 = vadd.f32 %v414, %v509
    %v511 = vpop.f32.mrb[0].mxu0
    %512 = vdwg.mxu0
    %v513 = vmax.f32 %v495, 0.0
    %v514 = vmax.f32 %v500, 0.0
    %v515 = vmax.f32 %v505, 0.0
    %v516 = vmax.f32 %v510, 0.0
    %v517 = vrot.slane %v513, 7
    %v518 = vrot.slane %v514, 7
    %v519 = vrot.slane %v515, 7
    %v520 = vrot.slane %v516, 7
    %v521 = vsel %vm133, %v519, %v520
    %v522 = vsel %vm133, %v518, %v519
    %v523 = vsel %vm133, %v517, %v518
    %v524 = vsel %vm133, %v520, %v517
    %v525 = vsel %vm142, %v524, 0.0
    %v526 = vsel %vm143, %v523, 0.0
    %v527 = vsel %vm144, %v522, 0.0
    %v528 = vsel %vm145, %v521, 0.0
    %v529 = vrot.slane %v513, 1
    %v530 = vrot.slane %v514, 1
    %v531 = vrot.slane %v515, 1
    %v532 = vrot.slane %v516, 1
    %v533 = vsel %vm158, %v531, %v532
    %v534 = vsel %vm158, %v530, %v531
    %v535 = vsel %vm158, %v529, %v530
    %v536 = vsel %vm158, %v532, %v529
    %v537 = vsel %vm167, %v535, 0.0
    %v538 = vsel %vm168, %v534, 0.0
    %v539 = vsel %vm169, %v533, 0.0
    %v540 = vsel %vm170, %v536, 0.0
    %545 = vrot.lane.b32.xlu0 %v513, 32
    %v546 = vpop.permute.xlu0 %545
    %547 = vrot.lane.b32.xlu0 %v514, 32
    %v548 = vpop.permute.xlu0 %547
    %549 = vrot.lane.b32.xlu0 %v515, 32
    %v550 = vpop.permute.xlu0 %549
    %551 = vrot.lane.b32.xlu0 %v516, 32
    %v552 = vpop.permute.xlu0 %551
    %561 = vrot.lane.b32.xlu0 %v537, 64
    %v562 = vpop.permute.xlu0 %561
    %563 = vrot.lane.b32.xlu0 %v538, 64
    %v564 = vpop.permute.xlu0 %563
    %565 = vrot.lane.b32.xlu0 %v539, 64
    %v566 = vpop.permute.xlu0 %565
    %567 = vrot.lane.b32.xlu0 %v540, 64
    %v568 = vpop.permute.xlu0 %567
    %v573 = vsel %vm401, %v525, %v546
    %v574 = vsel %vm401, %v526, %v548
    %v575 = vsel %vm401, %v527, %v550
    %v576 = vsel %vm401, %v528, %v552
    %v577 = vsel %vm406, %v573, %v562
    %v578 = vsel %vm406, %v574, %v564
    %v579 = vsel %vm406, %v575, %v566
    %v580 = vsel %vm406, %v576, %v568
    %v581 = vlaneseq
    %v582 = vshrl.u32 %v581, 7
    %v583 = vsub.s32 0, %v582
    %v584 = vrot.slane %v123, %v583
    %v586 = vsel %vm415, %v577, 0
    %v589 = vsel %vm415, %v578, 0
    %v592 = vsel %vm415, %v579, 0
    %v595 = vsel %vm415, %v580, 0
    %597 = vmatprep.subr.mxu0 0.0
    %598 = vmatpush1.msra.mxu0 %v105
    %599 = vmatprep.subr.mxu0 0.0
    %600 = vmatpush1.msra.mxu0 %v106
    %601 = vmatprep.subr.mxu0 0.0
    %602 = vmatpush1.msra.mxu0 %v107
    %603 = vmatprep.subr.mxu0 0.0
    %604 = vmatpush1.msra.mxu0 %v108
    %605 = vmatprep.subr.mxu0 0.0
    %606 = vmatpush1.msra.mxu0 %v109
    %607 = vmatprep.subr.mxu0 0.0
    %608 = vmatpush1.msra.mxu0 %v110
    %609 = vmatprep.subr.mxu0 0.0
    %610 = vmatpush1.msra.mxu0 %v111
    %611 = vmatprep.subr.mxu0 0.0
    %612 = vmatpush1.msra.mxu0 %v112
    %613 = vmatprep.subr.mxu0 0.0
    %614 = vmatpush1.msra.mxu0 %v113
    %615 = vmatprep.subr.mxu0 0.0
    %616 = vmatpush1.msra.mxu0 %v114
    %617 = vmatprep.subr.mxu0 0.0
    %618 = vmatpush1.msra.mxu0 %v115
    %619 = vmatprep.subr.mxu0 0.0
    %620 = vmatpush1.msra.mxu0 %v116
    %621 = vmatprep.subr.mxu0 0.0
    %622 = vmatpush1.msra.mxu0 0.0
    %623 = vmatprep.subr.mxu0 0.0
    %624 = vmatpush1.msra.mxu0 0.0
    %625 = vmatprep.subr.mxu0 0.0
    %626 = vmatpush1.msra.mxu0 0.0
    %627 = vmatprep.subr.mxu0 0.0
    %628 = vmatpush1.msra.mxu0 0.0
    %629 = vmatprep.subr.mxu0 0.0
    %630 = vmatpush1.msra.mxu0 0.0
    %631 = vmatprep.subr.mxu0 0.0
    %632 = vmatpush1.msra.mxu0 0.0
    %633 = vmatprep.subr.mxu0 0.0
    %634 = vmatpush1.msra.mxu0 0.0
    %635 = vmatprep.subr.mxu0 0.0
    %636 = vmatpush1.msra.mxu0 0.0
    %637 = vmatprep.subr.mxu0 0.0
    %638 = vmatpush1.msra.mxu0 0.0
    %639 = vmatprep.subr.mxu0 0.0
    %640 = vmatpush1.msra.mxu0 0.0
    %641 = vmatprep.subr.mxu0 0.0
    %642 = vmatpush1.msra.mxu0 0.0
    %643 = vmatprep.subr.mxu0 0.0
    %644 = vmatpush1.msra.mxu0 0.0
    %645 = vmatprep.subr.mxu0 0.0
    %646 = vmatpush1.msra.mxu0 0.0
    %647 = vmatprep.subr.mxu0 0.0
    %648 = vmatpush1.msra.mxu0 0.0
    %649 = vmatprep.subr.mxu0 0.0
    %650 = vmatpush1.msra.mxu0 0.0
    %651 = vmatprep.subr.mxu0 0.0
    %652 = vmatpush1.msra.mxu0 0.0
    %653 = vmatprep.subr.mxu0 0.0
    %654 = vmatpush1.msra.mxu0 0.0
    %655 = vmatprep.subr.mxu0 0.0
    %656 = vmatpush1.msra.mxu0 0.0
    %657 = vmatprep.subr.mxu0 0.0
    %658 = vmatpush1.msra.mxu0 0.0
    %659 = vmatprep.subr.mxu0 0.0
    %660 = vmatpush1.msra.mxu0 0.0
    %661 = vmatprep.mubr.f32.mxu0 0.0
    %662 = vmatmul.mubr.f32.gmra.mrb[0].mxu0 %v586
    %v663 = vpop.f32.mrb[0].mxu0
    %v664 = vadd.f32 %v584, %v663
    %v665 = vpop.f32.mrb[0].mxu0
    %666 = vmatprep.mubr.f32.mxu0 0.0
    %667 = vmatmul.mubr.f32.gmra.mrb[0].mxu0 %v589
    %v668 = vpop.f32.mrb[0].mxu0
    %v669 = vadd.f32 %v584, %v668
    %v670 = vpop.f32.mrb[0].mxu0
    %671 = vmatprep.mubr.f32.mxu0 0.0
    %672 = vmatmul.mubr.f32.gmra.mrb[0].mxu0 %v592
    %v673 = vpop.f32.mrb[0].mxu0
    %v674 = vadd.f32 %v584, %v673
    %v675 = vpop.f32.mrb[0].mxu0
    %676 = vmatprep.mubr.f32.mxu0 0.0
    %677 = vmatmul.mubr.f32.gmra.mrb[0].mxu0 %v595
    %v678 = vpop.f32.mrb[0].mxu0
    %v679 = vadd.f32 %v584, %v678
    %v680 = vpop.f32.mrb[0].mxu0
    %681 = vdwg.mxu0
    %v682 = vmax.f32 %v664, 0.0
    %v683 = vmax.f32 %v669, 0.0
    %v684 = vmax.f32 %v674, 0.0
    %v685 = vmax.f32 %v679, 0.0
    %v686 = vld [vmem:[%s1] sm:$0xff]
    %v687 = vld [vmem:[%s1 + $0x8] sm:$0xff]
    %v688 = vld [vmem:[%s1 + $0x10] sm:$0xff]
    %v689 = vld [vmem:[%s1 + $0x18] sm:$0xff]
    %691 = vset.pattern.permute.xlu0 0
    %692 = vperm.xlu0 %691, %v686
    %v693 = vpop.permute.xlu0 %692
    %696 = vset.pattern.permute.xlu0 0
    %697 = vperm.xlu0 %696, %v687
    %v698 = vpop.permute.xlu0 %697
    %701 = vset.pattern.permute.xlu0 0
    %702 = vperm.xlu0 %701, %v688
    %v703 = vpop.permute.xlu0 %702
    %706 = vset.pattern.permute.xlu0 0
    %707 = vperm.xlu0 %706, %v689
    %v708 = vpop.permute.xlu0 %707
    %v710 = vmul.f32 %v682, %v693
    %v711 = vmul.f32 %v683, %v698
    %v712 = vmul.f32 %v684, %v703
    %v713 = vmul.f32 %v685, %v708
    %v714 = vsel %vm401, %v710, -inf
    %v715 = vsel %vm401, %v711, -inf
    %v716 = vmax.f32 %v714, %v715
    %v717 = vrot.slane %v716, 4
    %v718 = vmax.f32 %v716, %v717
    %v719 = vrot.slane %v718, 2
    %v720 = vmax.f32 %v718, %v719
    %v721 = vrot.slane %v720, 1
    %v722 = vmax.f32 %v720, %v721
    %v723 = vsel %vm401, %v712, -inf
    %v724 = vsel %vm401, %v713, -inf
    %v725 = vmax.f32 %v723, %v724
    %v726 = vrot.slane %v725, 4
    %v727 = vmax.f32 %v725, %v726
    %v728 = vrot.slane %v727, 2
    %v729 = vmax.f32 %v727, %v728
    %v730 = vrot.slane %v729, 1
    %v731 = vmax.f32 %v729, %v730
    %vm732 = vcmask 1040384
    %v733 = vsel %vm732, %v722, %v731
    %v734 = vlaneseq
    %v735 = vshrl.u32 %v734, 7
    %v736 = vsub.s32 0, %v735
    %v737 = vrot.slane %v124, %v736
    %v739 = vsel %vm401, %v733, 0
    %741 = vmatprep.subr.mxu0 0.0
    %742 = vmatpush1.msra.mxu0 %v117
    %743 = vmatprep.subr.mxu0 0.0
    %744 = vmatpush1.msra.mxu0 %v118
    %745 = vmatprep.subr.mxu0 0.0
    %746 = vmatpush1.msra.mxu0 %v119
    %747 = vmatprep.subr.mxu0 0.0
    %748 = vmatpush1.msra.mxu0 %v120
    %749 = vmatprep.subr.mxu0 0.0
    %750 = vmatpush1.msra.mxu0 0.0
    %751 = vmatprep.subr.mxu0 0.0
    %752 = vmatpush1.msra.mxu0 0.0
    %753 = vmatprep.subr.mxu0 0.0
    %754 = vmatpush1.msra.mxu0 0.0
    %755 = vmatprep.subr.mxu0 0.0
    %756 = vmatpush1.msra.mxu0 0.0
    %757 = vmatprep.subr.mxu0 0.0
    %758 = vmatpush1.msra.mxu0 0.0
    %759 = vmatprep.subr.mxu0 0.0
    %760 = vmatpush1.msra.mxu0 0.0
    %761 = vmatprep.subr.mxu0 0.0
    %762 = vmatpush1.msra.mxu0 0.0
    %763 = vmatprep.subr.mxu0 0.0
    %764 = vmatpush1.msra.mxu0 0.0
    %765 = vmatprep.subr.mxu0 0.0
    %766 = vmatpush1.msra.mxu0 0.0
    %767 = vmatprep.subr.mxu0 0.0
    %768 = vmatpush1.msra.mxu0 0.0
    %769 = vmatprep.subr.mxu0 0.0
    %770 = vmatpush1.msra.mxu0 0.0
    %771 = vmatprep.subr.mxu0 0.0
    %772 = vmatpush1.msra.mxu0 0.0
    %773 = vmatprep.subr.mxu0 0.0
    %774 = vmatpush1.msra.mxu0 0.0
    %775 = vmatprep.subr.mxu0 0.0
    %776 = vmatpush1.msra.mxu0 0.0
    %777 = vmatprep.subr.mxu0 0.0
    %778 = vmatpush1.msra.mxu0 0.0
    %779 = vmatprep.subr.mxu0 0.0
    %780 = vmatpush1.msra.mxu0 0.0
    %781 = vmatprep.subr.mxu0 0.0
    %782 = vmatpush1.msra.mxu0 0.0
    %783 = vmatprep.subr.mxu0 0.0
    %784 = vmatpush1.msra.mxu0 0.0
    %785 = vmatprep.subr.mxu0 0.0
    %786 = vmatpush1.msra.mxu0 0.0
    %787 = vmatprep.subr.mxu0 0.0
    %788 = vmatpush1.msra.mxu0 0.0
    %789 = vmatprep.subr.mxu0 0.0
    %790 = vmatpush1.msra.mxu0 0.0
    %791 = vmatprep.subr.mxu0 0.0
    %792 = vmatpush1.msra.mxu0 0.0
    %793 = vmatprep.subr.mxu0 0.0
    %794 = vmatpush1.msra.mxu0 0.0
    %795 = vmatprep.subr.mxu0 0.0
    %796 = vmatpush1.msra.mxu0 0.0
    %797 = vmatprep.subr.mxu0 0.0
    %798 = vmatpush1.msra.mxu0 0.0
    %799 = vmatprep.subr.mxu0 0.0
    %800 = vmatpush1.msra.mxu0 0.0
    %801 = vmatprep.subr.mxu0 0.0
    %802 = vmatpush1.msra.mxu0 0.0
    %803 = vmatprep.subr.mxu0 0.0
    %804 = vmatpush1.msra.mxu0 0.0
    %805 = vmatprep.mubr.f32.mxu0 0.0
    %806 = vmatmul.mubr.f32.gmra.mrb[0].mxu0 %v739
    %v807 = vpop.f32.mrb[0].mxu0
    %v808 = vadd.f32 %v737, %v807
    %v809 = vpop.f32.mrb[0].mxu0
    %810 = vdwg.mxu0
    %v811 = vmax.f32 %v808, 0.0
    %vm812 = vcmask 254976
    %813 = vst.msk [vmem:[#allocation2] sm:$0x3] %vm812, %v811
    // Predicated region
    $region14: #{conv_words_encoder.1} parent=1 // pred_check
      _
    $region15: #{conv_words_encoder.1} parent=1 // pred_check_branch
      %815 = sbr.rel (0) target = $region17
    $region16: #{conv_words_encoder.1} parent=1 // pred_region
      %s817 = ssub.s32 32, 32
      %818 = vsyncadd [#allocation3], %s817
      %s820 = sshll.u32 [#allocation2], 4
      %s821 = int_to_ptr.vmem [resolvable:$true] %s820
      %823 = dma.vmem_to_hbm [thread:$0]  %s821, 32, %s3, [#allocation3]
    $region17: #{conv_words_encoder.1} parent=1 // pred_fallthru
      _
    // Predicated region
    $region18: #{conv_words_encoder.1} parent=1 // pred_check
      _
    $region19: #{conv_words_encoder.1} parent=1 // pred_check_branch
      %825 = sbr.rel (0) target = $region21
    $region20: #{conv_words_encoder.1} parent=1 // pred_region
      %826 = dma.done [#allocation3], 32
    $region21: #{conv_words_encoder.1} parent=1 // pred_fallthru
      _
    %827 = vsyncpa [#allocation3], 1

</llo_original>
